<compile_context>
chip_gen: v6e
topology: v6e:2x2x1
jax: 0.10.0
libtpu: 0.0.40
codegen_flags: <defaults>
</compile_context>

<pallas_src>
import numpy as np
import jax
import jax.numpy as jnp
from jax.experimental import pallas as pl
from jax.experimental.pallas import tpu as pltpu

LANES = 128   # every feature dim zero-padded to full lane width (lane-dense vregs / vst)


def _round_up(x, m):
    return (x + m - 1) // m * m


# ----------------------------- Pallas kernel --------------------------------
def make_encoder_kernel(n_layers, n_pad):
    W = LANES

    def kernel(nfeat_ref, a_ref, w_ref, nd_ref, out_ref):
        h = nfeat_ref[...]            # (Np, 128)  node features (lane padded)
        a = a_ref[...]                # (Np, Np)   folded mean-aggregation matrix (all layers)

        for l in range(n_layers):     # unrolled at trace time
            wb = l * 3 * W
            nb = l * 2 * n_pad
            # static (trace-time) slices of the packed slabs -> zero-cost views
            w1u = w_ref[wb: wb + W, :]                      # (128,128)
            wself = w_ref[wb + W: wb + 2 * W, :]            # (128,128)
            wneigh = w_ref[wb + 2 * W: wb + 3 * W, :]       # (128,128)
            u = nd_ref[nb: nb + n_pad, :]                   # (Np,128)  t_enc@w1t + b1
            d = nd_ref[nb + n_pad: nb + 2 * n_pad, :]       # (Np,128)  (B@e)@wneigh + biases

            # TimeEncodingLayer: relu(fc1(concat([h, cos(t*w+phi)])))  (time half pre-folded)
            h_self = jnp.maximum(
                jnp.dot(h, w1u, preferred_element_type=jnp.float32) + u, 0.0)

            # mean aggregation (src gather + dst segment-sum + grouped cumsum + /deg) folded to A
            neigh = jnp.dot(a, h_self, preferred_element_type=jnp.float32)

            # rst = fc_self(h_self) + fc_neigh(neigh); edge term & biases pre-folded into d
            out = (jnp.dot(h_self, wself, preferred_element_type=jnp.float32)
                   + jnp.dot(neigh, wneigh, preferred_element_type=jnp.float32)
                   + d)

            # encoder: act(dropout(feat)); dropout p=0 -> identity, act = relu
            h = jnp.maximum(out, 0.0)

        out_ref[...] = h

    return kernel


def gtc_encoder_pallas(nfeat_p, a_p, w_slab, nd_slab, n_layers):
    n_pad = nfeat_p.shape[0]
    vmem = pl.BlockSpec(memory_space=pltpu.MemorySpace.VMEM)
    in_bytes = sum(int(np.prod(x.shape)) * x.dtype.itemsize
                   for x in (nfeat_p, a_p, w_slab, nd_slab))
    # size the scoped VMEM limit from the real footprint (not a hard-coded 32 MiB)
    vmem_limit = int(min(100 << 20, max(32 << 20, 6 * in_bytes + (4 << 20))))
    return pl.pallas_call(
        make_encoder_kernel(n_layers, n_pad),
        out_shape=jax.ShapeDtypeStruct((n_pad, LANES), jnp.float32),
        in_specs=[vmem] * 4,
        out_specs=vmem,
        compiler_params=pltpu.CompilerParams(vmem_limit_bytes=vmem_limit),
    )(nfeat_p, a_p, w_slab, nd_slab)


# --------------------------- pure-JAX reference ------------------------------
def gtc_layer_ref(nfeat, t, efeat, src, dst, new_node_ids, degs, p):
    N = nfeat.shape[0]
    t_enc = jnp.cos(t * p["basis"] + p["phase"])
    h_self = jax.nn.relu(nfeat @ p["w1u"] + t_enc @ p["w1t"] + p["b1"])
    e = efeat @ p["we"] + p["be"]
    msg = h_self[src] + e
    neigh = jax.ops.segment_sum(msg, dst, num_segments=N)
    perm = np.concatenate(new_node_ids)
    parts = [jnp.cumsum(neigh[np.asarray(ids)], axis=0) for ids in new_node_ids]
    h_neighs = jnp.concatenate(parts, axis=0)
    ridx = np.zeros(N, dtype=np.int64)
    ridx[perm] = np.arange(N)
    neigh = h_neighs[ridx] / degs
    return h_self @ p["wself"] + p["bself"] + neigh @ p["wneigh"] + p["bneigh"]


def gtc_encoder_ref(layer_params, nfeat, t, efeat, src, dst, new_node_ids, degs):
    h = nfeat
    for p in layer_params:
        out = gtc_layer_ref(h, t, efeat, src, dst, new_node_ids, degs, p)
        h = jax.nn.relu(out)
    return h


# ------------------------------- param init ----------------------------------
def xavier(key, fan_in, fan_out, gain=np.sqrt(2.0)):
    bound = gain * np.sqrt(6.0 / (fan_in + fan_out))
    return jax.random.uniform(key, (fan_in, fan_out), jnp.float32, -bound, bound)


def init_layer_params(key, f_in, f_out, f_edge):
    keys = jax.random.split(key, 8)
    return {
        "basis": jnp.linspace(0.0, 9.0, f_in, dtype=jnp.float32).reshape(1, f_in),
        "phase": jnp.zeros((1, f_in), jnp.float32),
        "w1u": xavier(keys[0], f_in, f_in),
        "w1t": xavier(keys[1], f_in, f_in),
        "b1": 0.01 * jax.random.normal(keys[2], (1, f_in), jnp.float32),
        "we": xavier(keys[3], f_edge, f_in),
        "be": 0.01 * jax.random.normal(keys[4], (1, f_in), jnp.float32),
        "wself": xavier(keys[5], f_in, f_out),
        "bself": jnp.zeros((1, f_out), jnp.float32),
        "wneigh": xavier(keys[6], f_in, f_out),
        "bneigh": jnp.zeros((1, f_out), jnp.float32),
    }


# ------------------------- host-side exact folding ---------------------------
def build_structure_matrices(N, E, src, dst, new_node_ids, degs):
    """A = diag(1/deg) K M G applies to h_self; B = diag(1/deg) K M applies to edge embeds."""
    G = np.zeros((E, N), np.float64)
    G[np.arange(E), src] = 1.0                      # gather h_self[src]
    M = np.zeros((N, E), np.float64)
    M[dst, np.arange(E)] = 1.0                      # segment-sum over dst
    perm = np.concatenate(new_node_ids)
    S = np.zeros((N, N), np.float64)
    S[np.arange(N), perm] = 1.0                     # reorder into group layout
    group_id = np.zeros(N, np.int64)
    pos = 0
    for g, ids in enumerate(new_node_ids):
        group_id[pos:pos + len(ids)] = g
        pos += len(ids)
    i_idx = np.arange(N)[:, None]
    j_idx = np.arange(N)[None, :]
    C = ((group_id[:, None] == group_id[None, :]) & (j_idx <= i_idx)).astype(np.float64)
    K = S.T @ C @ S                                 # grouped cumsum + reorder back
    B = (1.0 / degs.reshape(N, 1)) * (K @ M)        # (N, E)
    A = B @ G                                       # (N, N)
    return A, B


def _pad2(x, rows, cols):
    out = np.zeros((rows, cols), np.float32)
    x = np.asarray(x, np.float64)
    out[:x.shape[0], :x.shape[1]] = x
    return out


def fold_layer_hostside(p, B_np, t_np, efeat_np, Np):
    """Precompute all h-independent terms of one GTCLayer (exact) and pad to lane width."""
    basis = np.asarray(p["basis"], np.float64)
    phase = np.asarray(p["phase"], np.float64)
    t_enc = np.cos(t_np * basis + phase)                                   # (N, f_in)
    u = t_enc @ np.asarray(p["w1t"], np.float64) + np.asarray(p["b1"], np.float64)
    e = efeat_np @ np.asarray(p["we"], np.float64) + np.asarray(p["be"], np.float64)
    c = B_np @ e                                                           # (N, f_in)
    d = (c @ np.asarray(p["wneigh"], np.float64)
         + np.asarray(p["bself"], np.float64) + np.asarray(p["bneigh"], np.float64))

    w1u = _pad2(p["w1u"], LANES, LANES)
    wself = _pad2(p["wself"], LANES, LANES)
    wneigh = _pad2(p["wneigh"], LANES, LANES)
    u_p = _pad2(u, Np, LANES)       # padded rows stay exactly zero
    d_p = _pad2(d, Np, LANES)
    w_slab = np.concatenate([w1u, wself, wneigh], axis=0)                  # (3*128, 128)
    nd_slab = np.concatenate([u_p, d_p], axis=0)                           # (2*Np, 128)
    return w_slab, nd_slab


# ---------------------------------- main --------------------------------------
if __name__ == "__main__":
    key = jax.random.PRNGKey(0)

    # small synthetic temporal-graph instance
    N, E = 8, 16                   # nodes, edges
    in_feats, n_hidden, out_feats = 16, 32, 16
    edge_feats = 8
    assert max(in_feats, n_hidden, out_feats, edge_feats) <= LANES

    k_nf, k_ts, k_ef, k_src, k_dst, k_p0, k_p1 = jax.random.split(key, 7)
    nfeat = jax.random.normal(k_nf, (N, in_feats), jnp.float32)
    timestamps = jax.random.uniform(k_ts, (N, 1), jnp.float32, 0.0, 10.0)
    efeat = jax.random.normal(k_ef, (E, edge_feats), jnp.float32)
    src = np.asarray(jax.random.randint(k_src, (E,), 0, N))
    dst = np.asarray(jax.random.randint(k_dst, (E,), 0, N))
    new_node_ids = [np.array([0, 3, 5]), np.array([1, 4, 6]), np.array([2, 7])]

    in_deg = np.zeros(N, np.float64)
    np.add.at(in_deg, dst, 1.0)
    deg_clamped = np.maximum(in_deg, 1.0)
    degs = jnp.asarray(deg_clamped.reshape(N, 1).astype(np.float32))

    # GTCEncoder(n_layers=2): GTCLayer(in->hidden), GTCLayer(hidden->out)
    layer_params = [
        init_layer_params(k_p0, in_feats, n_hidden, edge_feats),
        init_layer_params(k_p1, n_hidden, out_feats, edge_feats),
    ]
    n_layers = len(layer_params)

    # host-side exact folding + lane-dense padding + input packing
    Np = _round_up(N, 8)
    A_np, B_np = build_structure_matrices(N, E, src, dst, new_node_ids, deg_clamped)
    t_np = np.asarray(timestamps, np.float64)
    ef_np = np.asarray(efeat, np.float64)

    nfeat_p = jnp.asarray(_pad2(np.asarray(nfeat), Np, LANES))
    a_p = jnp.asarray(_pad2(A_np, Np, Np))
    w_slabs, nd_slabs = [], []
    for p in layer_params:
        ws, nds = fold_layer_hostside(p, B_np, t_np, ef_np, Np)
        w_slabs.append(ws)
        nd_slabs.append(nds)
    w_slab = jnp.asarray(np.concatenate(w_slabs, axis=0))      # (n_layers*3*128, 128)
    nd_slab = jnp.asarray(np.concatenate(nd_slabs, axis=0))    # (n_layers*2*Np, 128)

    out_p = gtc_encoder_pallas(nfeat_p, a_p, w_slab, nd_slab, n_layers)
    out_p = jax.block_until_ready(out_p)
    out_full = np.asarray(out_p)
    out = out_full[:N, :out_feats]

    ref = gtc_encoder_ref(layer_params, nfeat, timestamps, efeat, src, dst,
                          new_node_ids, degs)
    ref = jax.block_until_ready(ref)

    assert out.shape == (N, out_feats)
    np.testing.assert_allclose(out, np.asarray(ref), rtol=5e-4, atol=5e-4)
    # padded rows / lanes stay exactly zero (review correctness concern)
    assert np.all(out_full[N:, :] == 0.0)
    assert np.all(out_full[:, out_feats:] == 0.0)

    print("KERNEL_OK")
</pallas_src>

<mosaic_0001>
module attributes {stable_mosaic.version = 11 : i64} {
  func.func @kernel(%arg0: memref<8x128xf32, #tpu.memory_space<vmem>>, %arg1: memref<8x8xf32, #tpu.memory_space<vmem>>, %arg2: memref<768x128xf32, #tpu.memory_space<vmem>>, %arg3: memref<32x128xf32, #tpu.memory_space<vmem>>, %arg4: memref<8x128xf32, #tpu.memory_space<vmem>>) attributes {dimension_semantics = [], scalar_prefetch = 0 : i64, scratch_operands = 0 : i64, tpu.core_type = #tpu.core_type<tc>} {
    %c0 = arith.constant 0 : index
    %c0_0 = arith.constant 0 : index
    %0 = vector.load %arg0[%c0, %c0_0] : memref<8x128xf32, #tpu.memory_space<vmem>>, vector<8x128xf32>
    %c0_1 = arith.constant 0 : index
    %c0_2 = arith.constant 0 : index
    %1 = vector.load %arg1[%c0_1, %c0_2] : memref<8x8xf32, #tpu.memory_space<vmem>>, vector<8x8xf32>
    %c0_3 = arith.constant 0 : index
    %c0_4 = arith.constant 0 : index
    %2 = vector.load %arg2[%c0_3, %c0_4] : memref<768x128xf32, #tpu.memory_space<vmem>>, vector<128x128xf32>
    %c128 = arith.constant 128 : index
    %c0_5 = arith.constant 0 : index
    %3 = vector.load %arg2[%c128, %c0_5] : memref<768x128xf32, #tpu.memory_space<vmem>>, vector<128x128xf32>
    %c256 = arith.constant 256 : index
    %c0_6 = arith.constant 0 : index
    %4 = vector.load %arg2[%c256, %c0_6] : memref<768x128xf32, #tpu.memory_space<vmem>>, vector<128x128xf32>
    %c0_7 = arith.constant 0 : index
    %c0_8 = arith.constant 0 : index
    %5 = vector.load %arg3[%c0_7, %c0_8] : memref<32x128xf32, #tpu.memory_space<vmem>>, vector<8x128xf32>
    %c8 = arith.constant 8 : index
    %c0_9 = arith.constant 0 : index
    %6 = vector.load %arg3[%c8, %c0_9] : memref<32x128xf32, #tpu.memory_space<vmem>>, vector<8x128xf32>
    %cst = arith.constant dense<0.000000e+00> : vector<8x128xf32>
    %7 = tpu.matmul %0, %2, %cst {dimension_numbers = #tpu.dot_dimension_numbers<[1], [0], [0], [1], [0, 0, 1, 1], [], []>} : vector<8x128xf32>, vector<128x128xf32>, vector<8x128xf32> -> vector<8x128xf32>
    %8 = arith.addf %7, %5 : vector<8x128xf32>
    %cst_10 = arith.constant 0.000000e+00 : f32
    %9 = vector.broadcast %cst_10 : f32 to vector<8x128xf32>
    %10 = arith.maximumf %8, %9 : vector<8x128xf32>
    %cst_11 = arith.constant dense<0.000000e+00> : vector<8x128xf32>
    %11 = tpu.matmul %1, %10, %cst_11 {dimension_numbers = #tpu.dot_dimension_numbers<[1], [0], [0], [1], [0, 0, 1, 1], [], []>} : vector<8x8xf32>, vector<8x128xf32>, vector<8x128xf32> -> vector<8x128xf32>
    %cst_12 = arith.constant dense<0.000000e+00> : vector<8x128xf32>
    %12 = tpu.matmul %10, %3, %cst_12 {dimension_numbers = #tpu.dot_dimension_numbers<[1], [0], [0], [1], [0, 0, 1, 1], [], []>} : vector<8x128xf32>, vector<128x128xf32>, vector<8x128xf32> -> vector<8x128xf32>
    %cst_13 = arith.constant dense<0.000000e+00> : vector<8x128xf32>
    %13 = tpu.matmul %11, %4, %cst_13 {dimension_numbers = #tpu.dot_dimension_numbers<[1], [0], [0], [1], [0, 0, 1, 1], [], []>} : vector<8x128xf32>, vector<128x128xf32>, vector<8x128xf32> -> vector<8x128xf32>
    %14 = arith.addf %12, %13 : vector<8x128xf32>
    %15 = arith.addf %14, %6 : vector<8x128xf32>
    %cst_14 = arith.constant 0.000000e+00 : f32
    %16 = vector.broadcast %cst_14 : f32 to vector<8x128xf32>
    %17 = arith.maximumf %15, %16 : vector<8x128xf32>
    %c384 = arith.constant 384 : index
    %c0_15 = arith.constant 0 : index
    %18 = vector.load %arg2[%c384, %c0_15] : memref<768x128xf32, #tpu.memory_space<vmem>>, vector<128x128xf32>
    %c512 = arith.constant 512 : index
    %c0_16 = arith.constant 0 : index
    %19 = vector.load %arg2[%c512, %c0_16] : memref<768x128xf32, #tpu.memory_space<vmem>>, vector<128x128xf32>
    %c640 = arith.constant 640 : index
    %c0_17 = arith.constant 0 : index
    %20 = vector.load %arg2[%c640, %c0_17] : memref<768x128xf32, #tpu.memory_space<vmem>>, vector<128x128xf32>
    %c16 = arith.constant 16 : index
    %c0_18 = arith.constant 0 : index
    %21 = vector.load %arg3[%c16, %c0_18] : memref<32x128xf32, #tpu.memory_space<vmem>>, vector<8x128xf32>
    %c24 = arith.constant 24 : index
    %c0_19 = arith.constant 0 : index
    %22 = vector.load %arg3[%c24, %c0_19] : memref<32x128xf32, #tpu.memory_space<vmem>>, vector<8x128xf32>
    %cst_20 = arith.constant dense<0.000000e+00> : vector<8x128xf32>
    %23 = tpu.matmul %17, %18, %cst_20 {dimension_numbers = #tpu.dot_dimension_numbers<[1], [0], [0], [1], [0, 0, 1, 1], [], []>} : vector<8x128xf32>, vector<128x128xf32>, vector<8x128xf32> -> vector<8x128xf32>
    %24 = arith.addf %23, %21 : vector<8x128xf32>
    %cst_21 = arith.constant 0.000000e+00 : f32
    %25 = vector.broadcast %cst_21 : f32 to vector<8x128xf32>
    %26 = arith.maximumf %24, %25 : vector<8x128xf32>
    %cst_22 = arith.constant dense<0.000000e+00> : vector<8x128xf32>
    %27 = tpu.matmul %1, %26, %cst_22 {dimension_numbers = #tpu.dot_dimension_numbers<[1], [0], [0], [1], [0, 0, 1, 1], [], []>} : vector<8x8xf32>, vector<8x128xf32>, vector<8x128xf32> -> vector<8x128xf32>
    %cst_23 = arith.constant dense<0.000000e+00> : vector<8x128xf32>
    %28 = tpu.matmul %26, %19, %cst_23 {dimension_numbers = #tpu.dot_dimension_numbers<[1], [0], [0], [1], [0, 0, 1, 1], [], []>} : vector<8x128xf32>, vector<128x128xf32>, vector<8x128xf32> -> vector<8x128xf32>
    %cst_24 = arith.constant dense<0.000000e+00> : vector<8x128xf32>
    %29 = tpu.matmul %27, %20, %cst_24 {dimension_numbers = #tpu.dot_dimension_numbers<[1], [0], [0], [1], [0, 0, 1, 1], [], []>} : vector<8x128xf32>, vector<128x128xf32>, vector<8x128xf32> -> vector<8x128xf32>
    %30 = arith.addf %28, %29 : vector<8x128xf32>
    %31 = arith.addf %30, %22 : vector<8x128xf32>
    %cst_25 = arith.constant 0.000000e+00 : f32
    %32 = vector.broadcast %cst_25 : f32 to vector<8x128xf32>
    %33 = arith.maximumf %31, %32 : vector<8x128xf32>
    %c0_26 = arith.constant 0 : index
    %c0_27 = arith.constant 0 : index
    %34 = vector.load %arg4[%c0_26, %c0_27] : memref<8x128xf32, #tpu.memory_space<vmem>>, vector<8x128xf32>
    tpu.vector_store %arg4[%c0_26, %c0_27], %33 {strides = array<i32>} : memref<8x128xf32, #tpu.memory_space<vmem>>, vector<8x128xf32>,
    return
  }
}

</mosaic_0001>

<llo_original>
// kernel: tpu_custom_call.1
$region0: #{tpu_custom_call.1}
  #allocation0 [shape = 'u32[]', space=smem, size = 0x4, offset = 0x4, fixed_abs, tag = 'smem constant byte address 0x4 - core index']
  #allocation1 [shape = 'u32[144,128]{1,0:T(1,128)}', space=vmem, size = 0x12000, scoped, tag = 'internal scratch']
  %s0 = inlined_call_operand.hbm [shape: f32[8,128], index: 0, kind: input, shape index: {}]
  %s1 = inlined_call_operand.hbm [shape: f32[8,8], index: 1, kind: input, shape index: {}]
  %s2 = inlined_call_operand.hbm [shape: f32[768,128], index: 2, kind: input, shape index: {}]
  %s3 = inlined_call_operand.hbm [shape: f32[32,128], index: 3, kind: input, shape index: {}]
  %s4 = inlined_call_operand.hbm [shape: f32[8,128], index: 4, kind: output, shape index: {}]
  %s5 = sld [smem:[#allocation0]]
  $region42: #{tpu_custom_call.1} parent=0
    _
  %s7 = ssub.s32 1, %s5
  %s8 = scalar_select 0, %s7, %s5
  $region1: #{tpu_custom_call.1} parent=0
    #allocation2 [shape = 'u8[4096]{0}', space=vmem, size = 0x1000, scoped, tag = 'input window, operand 0, single buffered']
    #allocation3 [shape = 's32[1]{0}', space=sflag, size = 0x4, scoped, tag = 'scoped memory for tpu_custom_call.1']
    #allocation4 [shape = 's32[1]{0}', space=sflag, size = 0x4, scoped, tag = 'scoped memory for tpu_custom_call.1']
    #allocation5 [shape = 'u8[4096]{0}', space=vmem, size = 0x1000, scoped, tag = 'input window, operand 1, single buffered']
    #allocation6 [shape = 's32[1]{0}', space=sflag, size = 0x4, scoped, tag = 'scoped memory for tpu_custom_call.1']
    #allocation7 [shape = 'u8[393216]{0}', space=vmem, size = 0x60000, scoped, tag = 'input window, operand 2, single buffered']
    #allocation8 [shape = 'u8[16384]{0}', space=vmem, size = 0x4000, scoped, tag = 'input window, operand 3, single buffered']
    #allocation9 [shape = 's32[1]{0}', space=sflag, size = 0x4, scoped, tag = 'scoped memory for tpu_custom_call.1']
    #allocation10 [shape = 'u8[4096]{0}', space=vmem, size = 0x1000, scoped, tag = 'output window, operand 0, single buffered']
    %9 = vsyncpa [#allocation3], 0
    %10 = vsyncpa [#allocation6], 0
    %11 = vsyncpa [#allocation9], 0
    %12 = vsyncpa [#allocation4], 0
    // Predicated region
    $region2: #{tpu_custom_call.1} parent=1 // pred_check
      _
    $region3: #{tpu_custom_call.1} parent=1 // pred_check_branch
      %14 = sbr.rel (0) target = $region5
    $region4: #{tpu_custom_call.1} parent=1 // pred_region
      %s16 = ssub.s32 128, 128
      %17 = vsyncadd [#allocation3], %s16
      %s19 = sshll.u32 [#allocation2], 4
      %s20 = int_to_ptr.vmem [resolvable:$true] %s19
      %22 = dma.hbm_to_vmem [thread:$0]  %s0, 128, %s20, [#allocation3]
    $region5: #{tpu_custom_call.1} parent=1 // pred_fallthru
      _
    // Predicated region
    $region6: #{tpu_custom_call.1} parent=1 // pred_check
      _
    $region7: #{tpu_custom_call.1} parent=1 // pred_check_branch
      %24 = sbr.rel (0) target = $region9
    $region8: #{tpu_custom_call.1} parent=1 // pred_region
      %s26 = ssub.s32 128, 128
      %27 = vsyncadd [#allocation6], %s26
      %s29 = sshll.u32 [#allocation5], 4
      %s30 = int_to_ptr.vmem [resolvable:$true] %s29
      %32 = dma.hbm_to_vmem [thread:$0]  %s1, 128, %s30, [#allocation6]
    $region9: #{tpu_custom_call.1} parent=1 // pred_fallthru
      _
    // Predicated region
    $region10: #{tpu_custom_call.1} parent=1 // pred_check
      _
    $region11: #{tpu_custom_call.1} parent=1 // pred_check_branch
      %34 = sbr.rel (0) target = $region13
    $region12: #{tpu_custom_call.1} parent=1 // pred_region
      %s36 = ssub.s32 12288, 12288
      %37 = vsyncadd [#allocation6], %s36
      %s38 = sshll.u32 [#allocation7], 4
      %s39 = int_to_ptr.vmem [resolvable:$true] %s38
      %44 = dma.hbm_to_vmem [thread:$0]  %s2, 12288, %s39, [#allocation6], 128, 128, 8
    $region13: #{tpu_custom_call.1} parent=1 // pred_fallthru
      _
    // Predicated region
    $region14: #{tpu_custom_call.1} parent=1 // pred_check
      _
    $region15: #{tpu_custom_call.1} parent=1 // pred_check_branch
      %46 = sbr.rel (0) target = $region17
    $region16: #{tpu_custom_call.1} parent=1 // pred_region
      %s48 = ssub.s32 512, 512
      %49 = vsyncadd [#allocation9], %s48
      %s50 = sshll.u32 [#allocation8], 4
      %s51 = int_to_ptr.vmem [resolvable:$true] %s50
      %56 = dma.hbm_to_vmem [thread:$0]  %s3, 512, %s51, [#allocation9], 128, 128, 8
    $region17: #{tpu_custom_call.1} parent=1 // pred_fallthru
      _
    // Predicated region
    $region18: #{tpu_custom_call.1} parent=1 // pred_check
      _
    $region19: #{tpu_custom_call.1} parent=1 // pred_check_branch
      %58 = sbr.rel (0) target = $region21
    $region20: #{tpu_custom_call.1} parent=1 // pred_region
      %59 = dma.done [#allocation3], 128
    $region21: #{tpu_custom_call.1} parent=1 // pred_fallthru
      _
    // Predicated region
    $region22: #{tpu_custom_call.1} parent=1 // pred_check
      _
    $region23: #{tpu_custom_call.1} parent=1 // pred_check_branch
      %61 = sbr.rel (0) target = $region25
    $region24: #{tpu_custom_call.1} parent=1 // pred_region
      %62 = dma.done [#allocation6], 128
    $region25: #{tpu_custom_call.1} parent=1 // pred_fallthru
      _
    // Predicated region
    $region26: #{tpu_custom_call.1} parent=1 // pred_check
      _
    $region27: #{tpu_custom_call.1} parent=1 // pred_check_branch
      %64 = sbr.rel (0) target = $region29
    $region28: #{tpu_custom_call.1} parent=1 // pred_region
      %65 = dma.done [#allocation6], 12288
    $region29: #{tpu_custom_call.1} parent=1 // pred_fallthru
      _
    // Predicated region
    $region30: #{tpu_custom_call.1} parent=1 // pred_check
      _
    $region31: #{tpu_custom_call.1} parent=1 // pred_check_branch
      %67 = sbr.rel (0) target = $region33
    $region32: #{tpu_custom_call.1} parent=1 // pred_region
      %68 = dma.done [#allocation9], 512
    $region33: #{tpu_custom_call.1} parent=1 // pred_fallthru
      _
    %v69 = vld [vmem:[#allocation2] sm:$0xff]
    %v70 = vld [vmem:[#allocation5] sm:$0xff]
    %v71 = vld [vmem:[#allocation7] sm:$0xff]
    %v72 = vld [vmem:[#allocation7 + $0x8] sm:$0xff]
    %v73 = vld [vmem:[#allocation7 + $0x10] sm:$0xff]
    %v74 = vld [vmem:[#allocation7 + $0x18] sm:$0xff]
    %v75 = vld [vmem:[#allocation7 + $0x20] sm:$0xff]
    %v76 = vld [vmem:[#allocation7 + $0x28] sm:$0xff]
    %v77 = vld [vmem:[#allocation7 + $0x30] sm:$0xff]
    %v78 = vld [vmem:[#allocation7 + $0x38] sm:$0xff]
    %v79 = vld [vmem:[#allocation7 + $0x40] sm:$0xff]
    %v80 = vld [vmem:[#allocation7 + $0x48] sm:$0xff]
    %v81 = vld [vmem:[#allocation7 + $0x50] sm:$0xff]
    %v82 = vld [vmem:[#allocation7 + $0x58] sm:$0xff]
    %v83 = vld [vmem:[#allocation7 + $0x60] sm:$0xff]
    %v84 = vld [vmem:[#allocation7 + $0x68] sm:$0xff]
    %v85 = vld [vmem:[#allocation7 + $0x70] sm:$0xff]
    %v86 = vld [vmem:[#allocation7 + $0x78] sm:$0xff]
    %v87 = vld [vmem:[#allocation7 + $0x80] sm:$0xff]
    %v88 = vld [vmem:[#allocation7 + $0x88] sm:$0xff]
    %v89 = vld [vmem:[#allocation7 + $0x90] sm:$0xff]
    %v90 = vld [vmem:[#allocation7 + $0x98] sm:$0xff]
    %v91 = vld [vmem:[#allocation7 + $0xa0] sm:$0xff]
    %v92 = vld [vmem:[#allocation7 + $0xa8] sm:$0xff]
    %v93 = vld [vmem:[#allocation7 + $0xb0] sm:$0xff]
    %v94 = vld [vmem:[#allocation7 + $0xb8] sm:$0xff]
    %v95 = vld [vmem:[#allocation7 + $0xc0] sm:$0xff]
    %v96 = vld [vmem:[#allocation7 + $0xc8] sm:$0xff]
    %v97 = vld [vmem:[#allocation7 + $0xd0] sm:$0xff]
    %v98 = vld [vmem:[#allocation7 + $0xd8] sm:$0xff]
    %v99 = vld [vmem:[#allocation7 + $0xe0] sm:$0xff]
    %v100 = vld [vmem:[#allocation7 + $0xe8] sm:$0xff]
    %v101 = vld [vmem:[#allocation7 + $0xf0] sm:$0xff]
    %v102 = vld [vmem:[#allocation7 + $0xf8] sm:$0xff]
    %v103 = vld [vmem:[#allocation7 + $0x100] sm:$0xff]
    %v104 = vld [vmem:[#allocation7 + $0x108] sm:$0xff]
    %v105 = vld [vmem:[#allocation7 + $0x110] sm:$0xff]
    %v106 = vld [vmem:[#allocation7 + $0x118] sm:$0xff]
    %v107 = vld [vmem:[#allocation7 + $0x120] sm:$0xff]
    %v108 = vld [vmem:[#allocation7 + $0x128] sm:$0xff]
    %v109 = vld [vmem:[#allocation7 + $0x130] sm:$0xff]
    %v110 = vld [vmem:[#allocation7 + $0x138] sm:$0xff]
    %v111 = vld [vmem:[#allocation7 + $0x140] sm:$0xff]
    %v112 = vld [vmem:[#allocation7 + $0x148] sm:$0xff]
    %v113 = vld [vmem:[#allocation7 + $0x150] sm:$0xff]
    %v114 = vld [vmem:[#allocation7 + $0x158] sm:$0xff]
    %v115 = vld [vmem:[#allocation7 + $0x160] sm:$0xff]
    %v116 = vld [vmem:[#allocation7 + $0x168] sm:$0xff]
    %v117 = vld [vmem:[#allocation7 + $0x170] sm:$0xff]
    %v118 = vld [vmem:[#allocation7 + $0x178] sm:$0xff]
    %v119 = vld [vmem:[#allocation8] sm:$0xff]
    %v120 = vld [vmem:[#allocation8 + $0x8] sm:$0xff]
    %121 = vmatprep.subr.mxu0 0.0
    %122 = vmatpush1.msra.mxu0 %v86
    %123 = vmatprep.subr.mxu0 0.0
    %124 = vmatpush1.msra.mxu0 %v85
    %125 = vmatprep.subr.mxu0 0.0
    %126 = vmatpush1.msra.mxu0 %v84
    %127 = vmatprep.subr.mxu0 0.0
    %128 = vmatpush1.msra.mxu0 %v83
    %129 = vmatprep.subr.mxu0 0.0
    %130 = vmatpush1.msra.mxu0 %v82
    %131 = vmatprep.subr.mxu0 0.0
    %132 = vmatpush1.msra.mxu0 %v81
    %133 = vmatprep.subr.mxu0 0.0
    %134 = vmatpush1.msra.mxu0 %v80
    %135 = vmatprep.subr.mxu0 0.0
    %136 = vmatpush1.msra.mxu0 %v79
    %137 = vmatprep.subr.mxu0 0.0
    %138 = vmatpush1.msra.mxu0 %v78
    %139 = vmatprep.subr.mxu0 0.0
    %140 = vmatpush1.msra.mxu0 %v77
    %141 = vmatprep.subr.mxu0 0.0
    %142 = vmatpush1.msra.mxu0 %v76
    %143 = vmatprep.subr.mxu0 0.0
    %144 = vmatpush1.msra.mxu0 %v75
    %145 = vmatprep.subr.mxu0 0.0
    %146 = vmatpush1.msra.mxu0 %v74
    %147 = vmatprep.subr.mxu0 0.0
    %148 = vmatpush1.msra.mxu0 %v73
    %149 = vmatprep.subr.mxu0 0.0
    %150 = vmatpush1.msra.mxu0 %v72
    %151 = vmatprep.subr.mxu0 0.0
    %152 = vmatpush1.msra.mxu0 %v71
    %153 = vmatprep.subr.mxu0 0.0
    %154 = vmatpush2.msra.mxu0 0.0
    %155 = vmatprep.subr.mxu0 0.0
    %156 = vmatpush2.msra.mxu0 0.0
    %157 = vmatprep.subr.mxu0 0.0
    %158 = vmatpush2.msra.mxu0 0.0
    %159 = vmatprep.subr.mxu0 0.0
    %160 = vmatpush2.msra.mxu0 0.0
    %161 = vmatprep.subr.mxu0 0.0
    %162 = vmatpush2.msra.mxu0 0.0
    %163 = vmatprep.subr.mxu0 0.0
    %164 = vmatpush2.msra.mxu0 0.0
    %165 = vmatprep.subr.mxu0 0.0
    %166 = vmatpush2.msra.mxu0 0.0
    %167 = vmatprep.subr.mxu0 0.0
    %168 = vmatpush2.msra.mxu0 0.0
    %169 = vmatprep.subr.mxu0 0.0
    %170 = vmatpush2.msra.mxu0 0.0
    %171 = vmatprep.subr.mxu0 0.0
    %172 = vmatpush2.msra.mxu0 0.0
    %173 = vmatprep.subr.mxu0 0.0
    %174 = vmatpush2.msra.mxu0 0.0
    %175 = vmatprep.subr.mxu0 0.0
    %176 = vmatpush2.msra.mxu0 0.0
    %177 = vmatprep.subr.mxu0 0.0
    %178 = vmatpush2.msra.mxu0 0.0
    %179 = vmatprep.subr.mxu0 0.0
    %180 = vmatpush2.msra.mxu0 0.0
    %181 = vmatprep.subr.mxu0 0.0
    %182 = vmatpush2.msra.mxu0 0.0
    %183 = vmatprep.subr.mxu0 0.0
    %184 = vmatpush2.msra.mxu0 0.0
    %185 = vmatprep.mubr.f32.mxu0 0.0
    %186 = vmatmul.mubr.f32.gmra.mxu0 %v69
    %v187 = vpop.f32.mrf.mxu0
    %v188 = vadd.f32 %v119, %v187
    %v189 = vpop.f32.mrf.mxu0
    %190 = vdwg.mxu0
    %v191 = vmax.f32 %v188, 0.0
    %vm192 = vcmask 64512
    %v194 = vsel %vm192, %v70, 0
    %196 = vmatprep.subr.mxu0 0.0
    %197 = vmatpush1.msra.mxu0 0.0
    %198 = vmatprep.subr.mxu0 0.0
    %199 = vmatpush1.msra.mxu0 0.0
    %200 = vmatprep.subr.mxu0 0.0
    %201 = vmatpush1.msra.mxu0 0.0
    %202 = vmatprep.subr.mxu0 0.0
    %203 = vmatpush1.msra.mxu0 0.0
    %204 = vmatprep.subr.mxu0 0.0
    %205 = vmatpush1.msra.mxu0 0.0
    %206 = vmatprep.subr.mxu0 0.0
    %207 = vmatpush1.msra.mxu0 0.0
    %208 = vmatprep.subr.mxu0 0.0
    %209 = vmatpush1.msra.mxu0 0.0
    %210 = vmatprep.subr.mxu0 0.0
    %211 = vmatpush1.msra.mxu0 0.0
    %212 = vmatprep.subr.mxu0 0.0
    %213 = vmatpush1.msra.mxu0 0.0
    %214 = vmatprep.subr.mxu0 0.0
    %215 = vmatpush1.msra.mxu0 0.0
    %216 = vmatprep.subr.mxu0 0.0
    %217 = vmatpush1.msra.mxu0 0.0
    %218 = vmatprep.subr.mxu0 0.0
    %219 = vmatpush1.msra.mxu0 0.0
    %220 = vmatprep.subr.mxu0 0.0
    %221 = vmatpush1.msra.mxu0 0.0
    %222 = vmatprep.subr.mxu0 0.0
    %223 = vmatpush1.msra.mxu0 0.0
    %224 = vmatprep.subr.mxu0 0.0
    %225 = vmatpush1.msra.mxu0 0.0
    %226 = vmatprep.subr.mxu0 0.0
    %227 = vmatpush1.msra.mxu0 %v191
    %228 = vmatprep.subr.mxu0 0.0
    %229 = vmatpush2.msra.mxu0 0.0
    %230 = vmatprep.subr.mxu0 0.0
    %231 = vmatpush2.msra.mxu0 0.0
    %232 = vmatprep.subr.mxu0 0.0
    %233 = vmatpush2.msra.mxu0 0.0
    %234 = vmatprep.subr.mxu0 0.0
    %235 = vmatpush2.msra.mxu0 0.0
    %236 = vmatprep.subr.mxu0 0.0
    %237 = vmatpush2.msra.mxu0 0.0
    %238 = vmatprep.subr.mxu0 0.0
    %239 = vmatpush2.msra.mxu0 0.0
    %240 = vmatprep.subr.mxu0 0.0
    %241 = vmatpush2.msra.mxu0 0.0
    %242 = vmatprep.subr.mxu0 0.0
    %243 = vmatpush2.msra.mxu0 0.0
    %244 = vmatprep.subr.mxu0 0.0
    %245 = vmatpush2.msra.mxu0 0.0
    %246 = vmatprep.subr.mxu0 0.0
    %247 = vmatpush2.msra.mxu0 0.0
    %248 = vmatprep.subr.mxu0 0.0
    %249 = vmatpush2.msra.mxu0 0.0
    %250 = vmatprep.subr.mxu0 0.0
    %251 = vmatpush2.msra.mxu0 0.0
    %252 = vmatprep.subr.mxu0 0.0
    %253 = vmatpush2.msra.mxu0 0.0
    %254 = vmatprep.subr.mxu0 0.0
    %255 = vmatpush2.msra.mxu0 0.0
    %256 = vmatprep.subr.mxu0 0.0
    %257 = vmatpush2.msra.mxu0 0.0
    %258 = vmatprep.subr.mxu0 0.0
    %259 = vmatpush2.msra.mxu0 0.0
    %260 = vmatprep.mubr.f32.mxu0 0.0
    %261 = vmatmul.mubr.f32.gmra.mxu0 %v194
    %v262 = vpop.f32.mrf.mxu0
    %v263 = vadd.f32 0.0, %v262
    %v264 = vpop.f32.mrf.mxu0
    %265 = vdwg.mxu0
    %266 = vmatprep.subr.mxu0 0.0
    %267 = vmatpush1.msra.mxu0 %v118
    %268 = vmatprep.subr.mxu0 0.0
    %269 = vmatpush1.msra.mxu0 %v117
    %270 = vmatprep.subr.mxu0 0.0
    %271 = vmatpush1.msra.mxu0 %v116
    %272 = vmatprep.subr.mxu0 0.0
    %273 = vmatpush1.msra.mxu0 %v115
    %274 = vmatprep.subr.mxu0 0.0
    %275 = vmatpush1.msra.mxu0 %v114
    %276 = vmatprep.subr.mxu0 0.0
    %277 = vmatpush1.msra.mxu0 %v113
    %278 = vmatprep.subr.mxu0 0.0
    %279 = vmatpush1.msra.mxu0 %v112
    %280 = vmatprep.subr.mxu0 0.0
    %281 = vmatpush1.msra.mxu0 %v111
    %282 = vmatprep.subr.mxu0 0.0
    %283 = vmatpush1.msra.mxu0 %v110
    %284 = vmatprep.subr.mxu0 0.0
    %285 = vmatpush1.msra.mxu0 %v109
    %286 = vmatprep.subr.mxu0 0.0
    %287 = vmatpush1.msra.mxu0 %v108
    %288 = vmatprep.subr.mxu0 0.0
    %289 = vmatpush1.msra.mxu0 %v107
    %290 = vmatprep.subr.mxu0 0.0
    %291 = vmatpush1.msra.mxu0 %v106
    %292 = vmatprep.subr.mxu0 0.0
    %293 = vmatpush1.msra.mxu0 %v105
    %294 = vmatprep.subr.mxu0 0.0
    %295 = vmatpush1.msra.mxu0 %v104
    %296 = vmatprep.subr.mxu0 0.0
    %297 = vmatpush1.msra.mxu0 %v103
    %298 = vmatprep.subr.mxu0 0.0
    %299 = vmatpush2.msra.mxu0 0.0
    %300 = vmatprep.subr.mxu0 0.0
    %301 = vmatpush2.msra.mxu0 0.0
    %302 = vmatprep.subr.mxu0 0.0
    %303 = vmatpush2.msra.mxu0 0.0
    %304 = vmatprep.subr.mxu0 0.0
    %305 = vmatpush2.msra.mxu0 0.0
    %306 = vmatprep.subr.mxu0 0.0
    %307 = vmatpush2.msra.mxu0 0.0
    %308 = vmatprep.subr.mxu0 0.0
    %309 = vmatpush2.msra.mxu0 0.0
    %310 = vmatprep.subr.mxu0 0.0
    %311 = vmatpush2.msra.mxu0 0.0
    %312 = vmatprep.subr.mxu0 0.0
    %313 = vmatpush2.msra.mxu0 0.0
    %314 = vmatprep.subr.mxu0 0.0
    %315 = vmatpush2.msra.mxu0 0.0
    %316 = vmatprep.subr.mxu0 0.0
    %317 = vmatpush2.msra.mxu0 0.0
    %318 = vmatprep.subr.mxu0 0.0
    %319 = vmatpush2.msra.mxu0 0.0
    %320 = vmatprep.subr.mxu0 0.0
    %321 = vmatpush2.msra.mxu0 0.0
    %322 = vmatprep.subr.mxu0 0.0
    %323 = vmatpush2.msra.mxu0 0.0
    %324 = vmatprep.subr.mxu0 0.0
    %325 = vmatpush2.msra.mxu0 0.0
    %326 = vmatprep.subr.mxu0 0.0
    %327 = vmatpush2.msra.mxu0 0.0
    %328 = vmatprep.subr.mxu0 0.0
    %329 = vmatpush2.msra.mxu0 0.0
    %330 = vmatprep.mubr.f32.mxu0 0.0
    %331 = vmatmul.mubr.f32.gmra.mxu0 %v263
    %v332 = vpop.f32.mrf.mxu0
    %v333 = vadd.f32 0.0, %v332
    %v334 = vpop.f32.mrf.mxu0
    %335 = vdwg.mxu0
    %336 = vmatprep.subr.mxu0 0.0
    %337 = vmatpush1.msra.mxu0 %v102
    %338 = vmatprep.subr.mxu0 0.0
    %339 = vmatpush1.msra.mxu0 %v101
    %340 = vmatprep.subr.mxu0 0.0
    %341 = vmatpush1.msra.mxu0 %v100
    %342 = vmatprep.subr.mxu0 0.0
    %343 = vmatpush1.msra.mxu0 %v99
    %344 = vmatprep.subr.mxu0 0.0
    %345 = vmatpush1.msra.mxu0 %v98
    %346 = vmatprep.subr.mxu0 0.0
    %347 = vmatpush1.msra.mxu0 %v97
    %348 = vmatprep.subr.mxu0 0.0
    %349 = vmatpush1.msra.mxu0 %v96
    %350 = vmatprep.subr.mxu0 0.0
    %351 = vmatpush1.msra.mxu0 %v95
    %352 = vmatprep.subr.mxu0 0.0
    %353 = vmatpush1.msra.mxu0 %v94
    %354 = vmatprep.subr.mxu0 0.0
    %355 = vmatpush1.msra.mxu0 %v93
    %356 = vmatprep.subr.mxu0 0.0
    %357 = vmatpush1.msra.mxu0 %v92
    %358 = vmatprep.subr.mxu0 0.0
    %359 = vmatpush1.msra.mxu0 %v91
    %360 = vmatprep.subr.mxu0 0.0
    %361 = vmatpush1.msra.mxu0 %v90
    %362 = vmatprep.subr.mxu0 0.0
    %363 = vmatpush1.msra.mxu0 %v89
    %364 = vmatprep.subr.mxu0 0.0
    %365 = vmatpush1.msra.mxu0 %v88
    %366 = vmatprep.subr.mxu0 0.0
    %367 = vmatpush1.msra.mxu0 %v87
    %368 = vmatprep.subr.mxu0 0.0
    %369 = vmatpush2.msra.mxu0 0.0
    %370 = vmatprep.subr.mxu0 0.0
    %371 = vmatpush2.msra.mxu0 0.0
    %372 = vmatprep.subr.mxu0 0.0
    %373 = vmatpush2.msra.mxu0 0.0
    %374 = vmatprep.subr.mxu0 0.0
    %375 = vmatpush2.msra.mxu0 0.0
    %376 = vmatprep.subr.mxu0 0.0
    %377 = vmatpush2.msra.mxu0 0.0
    %378 = vmatprep.subr.mxu0 0.0
    %379 = vmatpush2.msra.mxu0 0.0
    %380 = vmatprep.subr.mxu0 0.0
    %381 = vmatpush2.msra.mxu0 0.0
    %382 = vmatprep.subr.mxu0 0.0
    %383 = vmatpush2.msra.mxu0 0.0
    %384 = vmatprep.subr.mxu0 0.0
    %385 = vmatpush2.msra.mxu0 0.0
    %386 = vmatprep.subr.mxu0 0.0
    %387 = vmatpush2.msra.mxu0 0.0
    %388 = vmatprep.subr.mxu0 0.0
    %389 = vmatpush2.msra.mxu0 0.0
    %390 = vmatprep.subr.mxu0 0.0
    %391 = vmatpush2.msra.mxu0 0.0
    %392 = vmatprep.subr.mxu0 0.0
    %393 = vmatpush2.msra.mxu0 0.0
    %394 = vmatprep.subr.mxu0 0.0
    %395 = vmatpush2.msra.mxu0 0.0
    %396 = vmatprep.subr.mxu0 0.0
    %397 = vmatpush2.msra.mxu0 0.0
    %398 = vmatprep.subr.mxu0 0.0
    %399 = vmatpush2.msra.mxu0 0.0
    %400 = vmatprep.mubr.f32.mxu0 0.0
    %401 = vmatmul.mubr.f32.gmra.mxu0 %v191
    %v402 = vpop.f32.mrf.mxu0
    %v403 = vadd.f32 %v333, %v402
    %v404 = vpop.f32.mrf.mxu0
    %405 = vdwg.mxu0
    %v406 = vadd.f32 %v403, %v120
    %v407 = vmax.f32 %v406, 0.0
    %v408 = vld [vmem:[#allocation7 + $0x180] sm:$0xff]
    %v409 = vld [vmem:[#allocation7 + $0x188] sm:$0xff]
    %v410 = vld [vmem:[#allocation7 + $0x190] sm:$0xff]
    %v411 = vld [vmem:[#allocation7 + $0x198] sm:$0xff]
    %v412 = vld [vmem:[#allocation7 + $0x1a0] sm:$0xff]
    %v413 = vld [vmem:[#allocation7 + $0x1a8] sm:$0xff]
    %v414 = vld [vmem:[#allocation7 + $0x1b0] sm:$0xff]
    %v415 = vld [vmem:[#allocation7 + $0x1b8] sm:$0xff]
    %v416 = vld [vmem:[#allocation7 + $0x1c0] sm:$0xff]
    %v417 = vld [vmem:[#allocation7 + $0x1c8] sm:$0xff]
    %v418 = vld [vmem:[#allocation7 + $0x1d0] sm:$0xff]
    %v419 = vld [vmem:[#allocation7 + $0x1d8] sm:$0xff]
    %v420 = vld [vmem:[#allocation7 + $0x1e0] sm:$0xff]
    %v421 = vld [vmem:[#allocation7 + $0x1e8] sm:$0xff]
    %v422 = vld [vmem:[#allocation7 + $0x1f0] sm:$0xff]
    %v423 = vld [vmem:[#allocation7 + $0x1f8] sm:$0xff]
    %v424 = vld [vmem:[#allocation7 + $0x200] sm:$0xff]
    %v425 = vld [vmem:[#allocation7 + $0x208] sm:$0xff]
    %v426 = vld [vmem:[#allocation7 + $0x210] sm:$0xff]
    %v427 = vld [vmem:[#allocation7 + $0x218] sm:$0xff]
    %v428 = vld [vmem:[#allocation7 + $0x220] sm:$0xff]
    %v429 = vld [vmem:[#allocation7 + $0x228] sm:$0xff]
    %v430 = vld [vmem:[#allocation7 + $0x230] sm:$0xff]
    %v431 = vld [vmem:[#allocation7 + $0x238] sm:$0xff]
    %v432 = vld [vmem:[#allocation7 + $0x240] sm:$0xff]
    %v433 = vld [vmem:[#allocation7 + $0x248] sm:$0xff]
    %v434 = vld [vmem:[#allocation7 + $0x250] sm:$0xff]
    %v435 = vld [vmem:[#allocation7 + $0x258] sm:$0xff]
    %v436 = vld [vmem:[#allocation7 + $0x260] sm:$0xff]
    %v437 = vld [vmem:[#allocation7 + $0x268] sm:$0xff]
    %v438 = vld [vmem:[#allocation7 + $0x270] sm:$0xff]
    %v439 = vld [vmem:[#allocation7 + $0x278] sm:$0xff]
    %v440 = vld [vmem:[#allocation7 + $0x280] sm:$0xff]
    %v441 = vld [vmem:[#allocation7 + $0x288] sm:$0xff]
    %v442 = vld [vmem:[#allocation7 + $0x290] sm:$0xff]
    %v443 = vld [vmem:[#allocation7 + $0x298] sm:$0xff]
    %v444 = vld [vmem:[#allocation7 + $0x2a0] sm:$0xff]
    %v445 = vld [vmem:[#allocation7 + $0x2a8] sm:$0xff]
    %v446 = vld [vmem:[#allocation7 + $0x2b0] sm:$0xff]
    %v447 = vld [vmem:[#allocation7 + $0x2b8] sm:$0xff]
    %v448 = vld [vmem:[#allocation7 + $0x2c0] sm:$0xff]
    %v449 = vld [vmem:[#allocation7 + $0x2c8] sm:$0xff]
    %v450 = vld [vmem:[#allocation7 + $0x2d0] sm:$0xff]
    %v451 = vld [vmem:[#allocation7 + $0x2d8] sm:$0xff]
    %v452 = vld [vmem:[#allocation7 + $0x2e0] sm:$0xff]
    %v453 = vld [vmem:[#allocation7 + $0x2e8] sm:$0xff]
    %v454 = vld [vmem:[#allocation7 + $0x2f0] sm:$0xff]
    %v455 = vld [vmem:[#allocation7 + $0x2f8] sm:$0xff]
    %v456 = vld [vmem:[#allocation8 + $0x10] sm:$0xff]
    %v457 = vld [vmem:[#allocation8 + $0x18] sm:$0xff]
    %458 = vmatprep.subr.mxu0 0.0
    %459 = vmatpush1.msra.mxu0 %v423
    %460 = vmatprep.subr.mxu0 0.0
    %461 = vmatpush1.msra.mxu0 %v422
    %462 = vmatprep.subr.mxu0 0.0
    %463 = vmatpush1.msra.mxu0 %v421
    %464 = vmatprep.subr.mxu0 0.0
    %465 = vmatpush1.msra.mxu0 %v420
    %466 = vmatprep.subr.mxu0 0.0
    %467 = vmatpush1.msra.mxu0 %v419
    %468 = vmatprep.subr.mxu0 0.0
    %469 = vmatpush1.msra.mxu0 %v418
    %470 = vmatprep.subr.mxu0 0.0
    %471 = vmatpush1.msra.mxu0 %v417
    %472 = vmatprep.subr.mxu0 0.0
    %473 = vmatpush1.msra.mxu0 %v416
    %474 = vmatprep.subr.mxu0 0.0
    %475 = vmatpush1.msra.mxu0 %v415
    %476 = vmatprep.subr.mxu0 0.0
    %477 = vmatpush1.msra.mxu0 %v414
    %478 = vmatprep.subr.mxu0 0.0
    %479 = vmatpush1.msra.mxu0 %v413
    %480 = vmatprep.subr.mxu0 0.0
    %481 = vmatpush1.msra.mxu0 %v412
    %482 = vmatprep.subr.mxu0 0.0
    %483 = vmatpush1.msra.mxu0 %v411
    %484 = vmatprep.subr.mxu0 0.0
    %485 = vmatpush1.msra.mxu0 %v410
    %486 = vmatprep.subr.mxu0 0.0
    %487 = vmatpush1.msra.mxu0 %v409
    %488 = vmatprep.subr.mxu0 0.0
    %489 = vmatpush1.msra.mxu0 %v408
    %490 = vmatprep.subr.mxu0 0.0
    %491 = vmatpush2.msra.mxu0 0.0
    %492 = vmatprep.subr.mxu0 0.0
    %493 = vmatpush2.msra.mxu0 0.0
    %494 = vmatprep.subr.mxu0 0.0
    %495 = vmatpush2.msra.mxu0 0.0
    %496 = vmatprep.subr.mxu0 0.0
    %497 = vmatpush2.msra.mxu0 0.0
    %498 = vmatprep.subr.mxu0 0.0
    %499 = vmatpush2.msra.mxu0 0.0
    %500 = vmatprep.subr.mxu0 0.0
    %501 = vmatpush2.msra.mxu0 0.0
    %502 = vmatprep.subr.mxu0 0.0
    %503 = vmatpush2.msra.mxu0 0.0
    %504 = vmatprep.subr.mxu0 0.0
    %505 = vmatpush2.msra.mxu0 0.0
    %506 = vmatprep.subr.mxu0 0.0
    %507 = vmatpush2.msra.mxu0 0.0
    %508 = vmatprep.subr.mxu0 0.0
    %509 = vmatpush2.msra.mxu0 0.0
    %510 = vmatprep.subr.mxu0 0.0
    %511 = vmatpush2.msra.mxu0 0.0
    %512 = vmatprep.subr.mxu0 0.0
    %513 = vmatpush2.msra.mxu0 0.0
    %514 = vmatprep.subr.mxu0 0.0
    %515 = vmatpush2.msra.mxu0 0.0
    %516 = vmatprep.subr.mxu0 0.0
    %517 = vmatpush2.msra.mxu0 0.0
    %518 = vmatprep.subr.mxu0 0.0
    %519 = vmatpush2.msra.mxu0 0.0
    %520 = vmatprep.subr.mxu0 0.0
    %521 = vmatpush2.msra.mxu0 0.0
    %522 = vmatprep.mubr.f32.mxu0 0.0
    %523 = vmatmul.mubr.f32.gmra.mxu0 %v407
    %v524 = vpop.f32.mrf.mxu0
    %v525 = vadd.f32 %v456, %v524
    %v526 = vpop.f32.mrf.mxu0
    %527 = vdwg.mxu0
    %v528 = vmax.f32 %v525, 0.0
    %529 = vmatprep.subr.mxu0 0.0
    %530 = vmatpush1.msra.mxu0 0.0
    %531 = vmatprep.subr.mxu0 0.0
    %532 = vmatpush1.msra.mxu0 0.0
    %533 = vmatprep.subr.mxu0 0.0
    %534 = vmatpush1.msra.mxu0 0.0
    %535 = vmatprep.subr.mxu0 0.0
    %536 = vmatpush1.msra.mxu0 0.0
    %537 = vmatprep.subr.mxu0 0.0
    %538 = vmatpush1.msra.mxu0 0.0
    %539 = vmatprep.subr.mxu0 0.0
    %540 = vmatpush1.msra.mxu0 0.0
    %541 = vmatprep.subr.mxu0 0.0
    %542 = vmatpush1.msra.mxu0 0.0
    %543 = vmatprep.subr.mxu0 0.0
    %544 = vmatpush1.msra.mxu0 0.0
    %545 = vmatprep.subr.mxu0 0.0
    %546 = vmatpush1.msra.mxu0 0.0
    %547 = vmatprep.subr.mxu0 0.0
    %548 = vmatpush1.msra.mxu0 0.0
    %549 = vmatprep.subr.mxu0 0.0
    %550 = vmatpush1.msra.mxu0 0.0
    %551 = vmatprep.subr.mxu0 0.0
    %552 = vmatpush1.msra.mxu0 0.0
    %553 = vmatprep.subr.mxu0 0.0
    %554 = vmatpush1.msra.mxu0 0.0
    %555 = vmatprep.subr.mxu0 0.0
    %556 = vmatpush1.msra.mxu0 0.0
    %557 = vmatprep.subr.mxu0 0.0
    %558 = vmatpush1.msra.mxu0 0.0
    %559 = vmatprep.subr.mxu0 0.0
    %560 = vmatpush1.msra.mxu0 %v528
    %561 = vmatprep.subr.mxu0 0.0
    %562 = vmatpush2.msra.mxu0 0.0
    %563 = vmatprep.subr.mxu0 0.0
    %564 = vmatpush2.msra.mxu0 0.0
    %565 = vmatprep.subr.mxu0 0.0
    %566 = vmatpush2.msra.mxu0 0.0
    %567 = vmatprep.subr.mxu0 0.0
    %568 = vmatpush2.msra.mxu0 0.0
    %569 = vmatprep.subr.mxu0 0.0
    %570 = vmatpush2.msra.mxu0 0.0
    %571 = vmatprep.subr.mxu0 0.0
    %572 = vmatpush2.msra.mxu0 0.0
    %573 = vmatprep.subr.mxu0 0.0
    %574 = vmatpush2.msra.mxu0 0.0
    %575 = vmatprep.subr.mxu0 0.0
    %576 = vmatpush2.msra.mxu0 0.0
    %577 = vmatprep.subr.mxu0 0.0
    %578 = vmatpush2.msra.mxu0 0.0
    %579 = vmatprep.subr.mxu0 0.0
    %580 = vmatpush2.msra.mxu0 0.0
    %581 = vmatprep.subr.mxu0 0.0
    %582 = vmatpush2.msra.mxu0 0.0
    %583 = vmatprep.subr.mxu0 0.0
    %584 = vmatpush2.msra.mxu0 0.0
    %585 = vmatprep.subr.mxu0 0.0
    %586 = vmatpush2.msra.mxu0 0.0
    %587 = vmatprep.subr.mxu0 0.0
    %588 = vmatpush2.msra.mxu0 0.0
    %589 = vmatprep.subr.mxu0 0.0
    %590 = vmatpush2.msra.mxu0 0.0
    %591 = vmatprep.subr.mxu0 0.0
    %592 = vmatpush2.msra.mxu0 0.0
    %593 = vmatprep.mubr.f32.mxu0 0.0
    %594 = vmatmul.mubr.f32.gmra.mxu0 %v194
    %v595 = vpop.f32.mrf.mxu0
    %v596 = vadd.f32 0.0, %v595
    %v597 = vpop.f32.mrf.mxu0
    %598 = vdwg.mxu0
    %599 = vmatprep.subr.mxu0 0.0
    %600 = vmatpush1.msra.mxu0 %v455
    %601 = vmatprep.subr.mxu0 0.0
    %602 = vmatpush1.msra.mxu0 %v454
    %603 = vmatprep.subr.mxu0 0.0
    %604 = vmatpush1.msra.mxu0 %v453
    %605 = vmatprep.subr.mxu0 0.0
    %606 = vmatpush1.msra.mxu0 %v452
    %607 = vmatprep.subr.mxu0 0.0
    %608 = vmatpush1.msra.mxu0 %v451
    %609 = vmatprep.subr.mxu0 0.0
    %610 = vmatpush1.msra.mxu0 %v450
    %611 = vmatprep.subr.mxu0 0.0
    %612 = vmatpush1.msra.mxu0 %v449
    %613 = vmatprep.subr.mxu0 0.0
    %614 = vmatpush1.msra.mxu0 %v448
    %615 = vmatprep.subr.mxu0 0.0
    %616 = vmatpush1.msra.mxu0 %v447
    %617 = vmatprep.subr.mxu0 0.0
    %618 = vmatpush1.msra.mxu0 %v446
    %619 = vmatprep.subr.mxu0 0.0
    %620 = vmatpush1.msra.mxu0 %v445
    %621 = vmatprep.subr.mxu0 0.0
    %622 = vmatpush1.msra.mxu0 %v444
    %623 = vmatprep.subr.mxu0 0.0
    %624 = vmatpush1.msra.mxu0 %v443
    %625 = vmatprep.subr.mxu0 0.0
    %626 = vmatpush1.msra.mxu0 %v442
    %627 = vmatprep.subr.mxu0 0.0
    %628 = vmatpush1.msra.mxu0 %v441
    %629 = vmatprep.subr.mxu0 0.0
    %630 = vmatpush1.msra.mxu0 %v440
    %631 = vmatprep.subr.mxu0 0.0
    %632 = vmatpush2.msra.mxu0 0.0
    %633 = vmatprep.subr.mxu0 0.0
    %634 = vmatpush2.msra.mxu0 0.0
    %635 = vmatprep.subr.mxu0 0.0
    %636 = vmatpush2.msra.mxu0 0.0
    %637 = vmatprep.subr.mxu0 0.0
    %638 = vmatpush2.msra.mxu0 0.0
    %639 = vmatprep.subr.mxu0 0.0
    %640 = vmatpush2.msra.mxu0 0.0
    %641 = vmatprep.subr.mxu0 0.0
    %642 = vmatpush2.msra.mxu0 0.0
    %643 = vmatprep.subr.mxu0 0.0
    %644 = vmatpush2.msra.mxu0 0.0
    %645 = vmatprep.subr.mxu0 0.0
    %646 = vmatpush2.msra.mxu0 0.0
    %647 = vmatprep.subr.mxu0 0.0
    %648 = vmatpush2.msra.mxu0 0.0
    %649 = vmatprep.subr.mxu0 0.0
    %650 = vmatpush2.msra.mxu0 0.0
    %651 = vmatprep.subr.mxu0 0.0
    %652 = vmatpush2.msra.mxu0 0.0
    %653 = vmatprep.subr.mxu0 0.0
    %654 = vmatpush2.msra.mxu0 0.0
    %655 = vmatprep.subr.mxu0 0.0
    %656 = vmatpush2.msra.mxu0 0.0
    %657 = vmatprep.subr.mxu0 0.0
    %658 = vmatpush2.msra.mxu0 0.0
    %659 = vmatprep.subr.mxu0 0.0
    %660 = vmatpush2.msra.mxu0 0.0
    %661 = vmatprep.subr.mxu0 0.0
    %662 = vmatpush2.msra.mxu0 0.0
    %663 = vmatprep.mubr.f32.mxu0 0.0
    %664 = vmatmul.mubr.f32.gmra.mxu0 %v596
    %v665 = vpop.f32.mrf.mxu0
    %v666 = vadd.f32 0.0, %v665
    %v667 = vpop.f32.mrf.mxu0
    %668 = vdwg.mxu0
    %669 = vmatprep.subr.mxu0 0.0
    %670 = vmatpush1.msra.mxu0 %v439
    %671 = vmatprep.subr.mxu0 0.0
    %672 = vmatpush1.msra.mxu0 %v438
    %673 = vmatprep.subr.mxu0 0.0
    %674 = vmatpush1.msra.mxu0 %v437
    %675 = vmatprep.subr.mxu0 0.0
    %676 = vmatpush1.msra.mxu0 %v436
    %677 = vmatprep.subr.mxu0 0.0
    %678 = vmatpush1.msra.mxu0 %v435
    %679 = vmatprep.subr.mxu0 0.0
    %680 = vmatpush1.msra.mxu0 %v434
    %681 = vmatprep.subr.mxu0 0.0
    %682 = vmatpush1.msra.mxu0 %v433
    %683 = vmatprep.subr.mxu0 0.0
    %684 = vmatpush1.msra.mxu0 %v432
    %685 = vmatprep.subr.mxu0 0.0
    %686 = vmatpush1.msra.mxu0 %v431
    %687 = vmatprep.subr.mxu0 0.0
    %688 = vmatpush1.msra.mxu0 %v430
    %689 = vmatprep.subr.mxu0 0.0
    %690 = vmatpush1.msra.mxu0 %v429
    %691 = vmatprep.subr.mxu0 0.0
    %692 = vmatpush1.msra.mxu0 %v428
    %693 = vmatprep.subr.mxu0 0.0
    %694 = vmatpush1.msra.mxu0 %v427
    %695 = vmatprep.subr.mxu0 0.0
    %696 = vmatpush1.msra.mxu0 %v426
    %697 = vmatprep.subr.mxu0 0.0
    %698 = vmatpush1.msra.mxu0 %v425
    %699 = vmatprep.subr.mxu0 0.0
    %700 = vmatpush1.msra.mxu0 %v424
    %701 = vmatprep.subr.mxu0 0.0
    %702 = vmatpush2.msra.mxu0 0.0
    %703 = vmatprep.subr.mxu0 0.0
    %704 = vmatpush2.msra.mxu0 0.0
    %705 = vmatprep.subr.mxu0 0.0
    %706 = vmatpush2.msra.mxu0 0.0
    %707 = vmatprep.subr.mxu0 0.0
    %708 = vmatpush2.msra.mxu0 0.0
    %709 = vmatprep.subr.mxu0 0.0
    %710 = vmatpush2.msra.mxu0 0.0
    %711 = vmatprep.subr.mxu0 0.0
    %712 = vmatpush2.msra.mxu0 0.0
    %713 = vmatprep.subr.mxu0 0.0
    %714 = vmatpush2.msra.mxu0 0.0
    %715 = vmatprep.subr.mxu0 0.0
    %716 = vmatpush2.msra.mxu0 0.0
    %717 = vmatprep.subr.mxu0 0.0
    %718 = vmatpush2.msra.mxu0 0.0
    %719 = vmatprep.subr.mxu0 0.0
    %720 = vmatpush2.msra.mxu0 0.0
    %721 = vmatprep.subr.mxu0 0.0
    %722 = vmatpush2.msra.mxu0 0.0
    %723 = vmatprep.subr.mxu0 0.0
    %724 = vmatpush2.msra.mxu0 0.0
    %725 = vmatprep.subr.mxu0 0.0
    %726 = vmatpush2.msra.mxu0 0.0
    %727 = vmatprep.subr.mxu0 0.0
    %728 = vmatpush2.msra.mxu0 0.0
    %729 = vmatprep.subr.mxu0 0.0
    %730 = vmatpush2.msra.mxu0 0.0
    %731 = vmatprep.subr.mxu0 0.0
    %732 = vmatpush2.msra.mxu0 0.0
    %733 = vmatprep.mubr.f32.mxu0 0.0
    %734 = vmatmul.mubr.f32.gmra.mxu0 %v528
    %v735 = vpop.f32.mrf.mxu0
    %v736 = vadd.f32 %v666, %v735
    %v737 = vpop.f32.mrf.mxu0
    %738 = vdwg.mxu0
    %v739 = vadd.f32 %v736, %v457
    %v740 = vmax.f32 %v739, 0.0
    %741 = vst [vmem:[#allocation10] sm:$0xff] %v740
    // Predicated region
    $region34: #{tpu_custom_call.1} parent=1 // pred_check
      _
    $region35: #{tpu_custom_call.1} parent=1 // pred_check_branch
      %743 = sbr.rel (0) target = $region37
    $region36: #{tpu_custom_call.1} parent=1 // pred_region
      %s745 = ssub.s32 128, 128
      %746 = vsyncadd [#allocation4], %s745
      %s748 = sshll.u32 [#allocation10], 4
      %s749 = int_to_ptr.vmem [resolvable:$true] %s748
      %751 = dma.vmem_to_hbm [thread:$0]  %s749, 128, %s4, [#allocation4]
    $region37: #{tpu_custom_call.1} parent=1 // pred_fallthru
      _
    // Predicated region
    $region38: #{tpu_custom_call.1} parent=1 // pred_check
      _
    $region39: #{tpu_custom_call.1} parent=1 // pred_check_branch
      %753 = sbr.rel (0) target = $region41
    $region40: #{tpu_custom_call.1} parent=1 // pred_region
      %754 = dma.done [#allocation4], 128
    $region41: #{tpu_custom_call.1} parent=1 // pred_fallthru
      _
    %755 = vsyncpa [#allocation3], 1
    %756 = vsyncpa [#allocation6], 1
    %757 = vsyncpa [#allocation9], 1
    %758 = vsyncpa [#allocation4], 1

</llo_original>
